<compile_context>
chip_gen: v5e
topology: v5e:2x2
jax: 0.10.0
libtpu: 0.0.40
codegen_flags: <defaults>
</compile_context>

<pallas_src>
import jax
import jax.numpy as jnp
from jax import lax
from jax.experimental import pallas as pl
from jax.experimental.pallas import tpu as pltpu


def _round_up(x: int, m: int) -> int:
    return ((x + m - 1) // m) * m


def _pick_tile(dim_p: int, unit: int, cap: int) -> int:
    """Largest multiple of `unit` that divides dim_p and is <= cap (>= unit)."""
    best = unit
    t = unit
    limit = min(dim_p, cap)
    while t <= limit:
        if dim_p % t == 0:
            best = t
        t += unit
    return best


def _error_matmul_kernel(e_ref, w_ref, o_ref):
    """out[m, n] += sum_k e[m, k] * w[n, k].

    e_ref: (tM, tK)  error tile
    w_ref: (tN, tK)  weight tile (torch layout: (out, in)); contraction is
                     expressed via dot_general so no transpose is materialized.
    o_ref: (tM, tN)  f32 output tile (block index constant over k -> resident
                     accumulator, no scratch needed).
    """
    # NOTE: program_id only at kernel top level (never inside pl.when bodies).
    k = pl.program_id(2)

    @pl.when(k == 0)
    def _():
        o_ref[...] = jnp.zeros_like(o_ref)

    o_ref[...] += lax.dot_general(
        e_ref[...], w_ref[...],
        dimension_numbers=(((1,), (1,)), ((), ())),
        preferred_element_type=jnp.float32,
    )


# Below this many MACs the wrapper / padding overhead dominates; use plain jnp.
_SMALL_MAC_THRESHOLD = 2 * 1024 * 1024


def _error_matmul_pallas(error, weight):
    """error @ weight.T via a tiled Pallas matmul (error: (E, in), weight: (out, in))."""
    E, in_f = error.shape
    out_f = weight.shape[0]

    # Pad only to the minimal (8, 128) alignment; tiles are divisors of the
    # padded dims, so there are never mostly-zero tail tiles.
    rows_p = _round_up(E, 8)
    out_p = _round_up(out_f, 128)
    in_p = _round_up(in_f, 128)

    tM = _pick_tile(rows_p, 8, 512)
    tN = _pick_tile(out_p, 128, 512)
    tK = _pick_tile(in_p, 128, 1024)

    # v7x megacore: ensure at least one "parallel" grid axis has extent >= 2
    # (no effect on v5e/v6e, which have a single TensorCore).
    if rows_p // tM == 1 and out_p // tN == 1:
        if tN >= 256 and tN % 256 == 0:
            tN //= 2
        elif tM >= 16 and tM % 16 == 0:
            tM //= 2

    # Conditional padding: skip the HBM copy entirely when already aligned.
    if rows_p == E and in_p == in_f:
        e_p = error
    else:
        e_p = jnp.pad(error, ((0, rows_p - E), (0, in_p - in_f)))
    if out_p == out_f and in_p == in_f:
        w_p = weight
    else:
        w_p = jnp.pad(weight, ((0, out_p - out_f), (0, in_p - in_f)))

    grid = (rows_p // tM, out_p // tN, in_p // tK)

    cost = pl.CostEstimate(
        flops=2 * rows_p * in_p * out_p,
        transcendentals=0,
        bytes_accessed=4 * (rows_p * in_p * (out_p // tN)     # error re-streamed per j
                            + out_p * in_p * (rows_p // tM)   # weight re-streamed per i
                            + rows_p * out_p),
    )

    out = pl.pallas_call(
        _error_matmul_kernel,
        out_shape=jax.ShapeDtypeStruct((rows_p, out_p), jnp.float32),
        grid_spec=pltpu.PrefetchScalarGridSpec(
            num_scalar_prefetch=0,
            grid=grid,
            in_specs=[
                pl.BlockSpec((tM, tK), lambda i, j, k: (i, k)),   # error tile
                pl.BlockSpec((tN, tK), lambda i, j, k: (j, k)),   # weight tile (out, in)
            ],
            out_specs=pl.BlockSpec((tM, tN), lambda i, j, k: (i, j)),
        ),
        compiler_params=pltpu.CompilerParams(
            dimension_semantics=("parallel", "parallel", "arbitrary"),
            vmem_limit_bytes=32 * 1024 * 1024,   # fits v5e/v6e/v7x scoped VMEM
        ),
        cost_estimate=cost,
    )(e_p, w_p)

    if rows_p != E or out_p != out_f:
        out = out[:E, :out_f]
    return out


def linear_transformer(center, error, weight, bias=None):
    """Pallas forward of LinearTransformer.

    center: (in_features,) or (in_features, 1)   (squeezed like torch)
    error:  (E, in_features)
    weight: (out_features, in_features)
    bias:   (out_features,) or None
    returns: (center_out, error_out)
    """
    weight = jnp.asarray(weight, jnp.float32)
    error = jnp.asarray(error, jnp.float32)
    c = jnp.squeeze(jnp.asarray(center, jnp.float32))

    # Center path: a single (out, in) @ (in,) mat-vec + bias is negligible next
    # to the (E, in) x (in, out) error matmul, so it is done with plain jnp in
    # the wrapper (per perf review) instead of fusing it into the kernel.
    center_out = jnp.squeeze(weight @ c)
    if bias is not None:
        bias = jnp.asarray(bias, jnp.float32)
        if bias.size == 1:
            # torch: len(bias) == 1 -> center unsqueezed to (1,) before the add.
            center_out = jnp.atleast_1d(center_out) + jnp.ravel(bias)
        else:
            center_out = center_out + bias

    E, in_f = error.shape
    out_f = weight.shape[0]
    if E * in_f * out_f < _SMALL_MAC_THRESHOLD:
        # Small-problem fallback: XLA's native dot wins at tiny shapes.
        error_out = error @ weight.T
    else:
        error_out = _error_matmul_pallas(error, weight)

    return center_out, error_out


if __name__ == "__main__":
    key = jax.random.PRNGKey(0)
    k_w, k_b, k_c, k_e = jax.random.split(key, 4)

    # Shapes chosen small but above the small-problem cutoff so the Pallas
    # kernel path is exercised.
    in_features = 256
    out_features = 256
    num_error_terms = 128

    weight = jax.random.normal(k_w, (out_features, in_features), dtype=jnp.float32)
    bias = jax.random.normal(k_b, (out_features,), dtype=jnp.float32)
    center = jax.random.normal(k_c, (in_features, 1), dtype=jnp.float32)   # squeezed inside
    error = jax.random.normal(k_e, (num_error_terms, in_features), dtype=jnp.float32)

    center_out, error_out = linear_transformer(center, error, weight, bias)
    jax.block_until_ready((center_out, error_out))

    # Reference check (plain JAX)
    ref_center = weight @ jnp.squeeze(center) + bias
    ref_error = error @ weight.T
    assert center_out.shape == (out_features,)
    assert error_out.shape == (num_error_terms, out_features)
    assert jnp.allclose(center_out, ref_center, atol=1e-4, rtol=1e-4)
    assert jnp.allclose(error_out, ref_error, atol=1e-4, rtol=1e-4)

    # Also exercise the small-problem fallback and the bias=None path.
    c2, e2 = linear_transformer(center[:32], error[:8, :32], weight[:16, :32], None)
    jax.block_until_ready((c2, e2))
    assert jnp.allclose(c2, weight[:16, :32] @ jnp.squeeze(center[:32]), atol=1e-5, rtol=1e-5)
    assert jnp.allclose(e2, error[:8, :32] @ weight[:16, :32].T, atol=1e-5, rtol=1e-5)

    print("KERNEL_OK")
</pallas_src>

<mosaic_0001>
module attributes {stable_mosaic.version = 11 : i64} {
  func.func @_error_matmul_kernel(%arg0: i32, %arg1: i32, %arg2: i32, %arg3: memref<128x256xf32, #tpu.memory_space<vmem>>, %arg4: memref<128x256xf32, #tpu.memory_space<vmem>>, %arg5: memref<128x128xf32, #tpu.memory_space<vmem>>) attributes {dimension_semantics = [#tpu.dimension_semantics<parallel>, #tpu.dimension_semantics<parallel>, #tpu.dimension_semantics<arbitrary>], iteration_bounds = array<i64: 1, 2, 1>, scalar_prefetch = 0 : i64, scratch_operands = 0 : i64, tpu.core_type = #tpu.core_type<tc>, window_params = [{transform_indices = @transform_0, window_bounds = array<i64: 128, 256>}, {transform_indices = @transform_1, window_bounds = array<i64: 128, 256>}, {transform_indices = @transform_2, window_bounds = array<i64: 128, 128>}]} {
    %c0_i32 = arith.constant 0 : i32
    %0 = arith.cmpi eq, %arg2, %c0_i32 : i32
    %1 = arith.extui %0 : i1 to i32
    %c0_i32_0 = arith.constant 0 : i32
    %2 = arith.cmpi ne, %1, %c0_i32_0 : i32
    scf.if %2 {
      %cst_8 = arith.constant 0.000000e+00 : f32
      %9 = vector.broadcast %cst_8 : f32 to vector<128x128xf32>
      %c0_9 = arith.constant 0 : index
      %c0_10 = arith.constant 0 : index
      %10 = vector.load %arg5[%c0_9, %c0_10] : memref<128x128xf32, #tpu.memory_space<vmem>>, vector<128x128xf32>
      tpu.vector_store %arg5[%c0_9, %c0_10], %9 {strides = array<i32>} : memref<128x128xf32, #tpu.memory_space<vmem>>, vector<128x128xf32>,
    } else {
    }
    %c0 = arith.constant 0 : index
    %c0_1 = arith.constant 0 : index
    %3 = vector.load %arg5[%c0, %c0_1] : memref<128x128xf32, #tpu.memory_space<vmem>>, vector<128x128xf32>
    %c0_2 = arith.constant 0 : index
    %c0_3 = arith.constant 0 : index
    %4 = vector.load %arg3[%c0_2, %c0_3] : memref<128x256xf32, #tpu.memory_space<vmem>>, vector<128x256xf32>
    %c0_4 = arith.constant 0 : index
    %c0_5 = arith.constant 0 : index
    %5 = vector.load %arg4[%c0_4, %c0_5] : memref<128x256xf32, #tpu.memory_space<vmem>>, vector<128x256xf32>
    %cst = arith.constant dense<0.000000e+00> : vector<128x128xf32>
    %6 = tpu.matmul %4, %5, %cst {dimension_numbers = #tpu.dot_dimension_numbers<[1], [1], [0], [0], [0, 0, 1, 0], [], []>} : vector<128x256xf32>, vector<128x256xf32>, vector<128x128xf32> -> vector<128x128xf32>
    %7 = arith.addf %3, %6 : vector<128x128xf32>
    %c0_6 = arith.constant 0 : index
    %c0_7 = arith.constant 0 : index
    %8 = vector.load %arg5[%c0_6, %c0_7] : memref<128x128xf32, #tpu.memory_space<vmem>>, vector<128x128xf32>
    tpu.vector_store %arg5[%c0_6, %c0_7], %7 {strides = array<i32>} : memref<128x128xf32, #tpu.memory_space<vmem>>, vector<128x128xf32>,
    return
  }
  func.func @transform_0(%arg0: i32, %arg1: i32, %arg2: i32) -> (i32, i32) {
    %c0_i32 = arith.constant 0 : i32
    return %arg0, %arg2 : i32, i32
  }
  func.func @transform_1(%arg0: i32, %arg1: i32, %arg2: i32) -> (i32, i32) {
    %c0_i32 = arith.constant 0 : i32
    return %arg1, %arg2 : i32, i32
  }
  func.func @transform_2(%arg0: i32, %arg1: i32, %arg2: i32) -> (i32, i32) {
    %c0_i32 = arith.constant 0 : i32
    return %arg0, %arg1 : i32, i32
  }
}

</mosaic_0001>

<llo_original>
// kernel: tpu_custom_call.1
$region0: #{tpu_custom_call.1}
  #allocation0 [shape = 'u32[]', space=smem, size = 0x4, offset = 0x4, fixed_abs, tag = 'smem constant byte address 0x4 - core index']
  #allocation1 [shape = 'u32[72,128]{1,0:T(1,128)}', space=vmem, size = 0x9000, scoped, tag = 'internal scratch']
  %s0 = inlined_call_operand.hbm [shape: f32[128,256], index: 0, kind: input, shape index: {}]
  %s1 = inlined_call_operand.hbm [shape: f32[256,256], index: 1, kind: input, shape index: {}]
  %s2 = inlined_call_operand.hbm [shape: f32[128,256], index: 2, kind: output, shape index: {}]
  %s3 = sld [smem:[#allocation0]]
  $region53: #{tpu_custom_call.1} parent=0
    _
  %s5 = ssub.s32 1, %s3
  %s6 = scalar_select 0, %s5, %s3
  $region1: #{tpu_custom_call.1} parent=0
    #allocation2 [shape = 'u8[131072]{0}', space=vmem, size = 0x20000, scoped, tag = 'input window, operand 0, single buffered']
    #allocation3 [shape = 's32[2]{0}', space=sflag, size = 0x8, scoped, tag = 'scoped memory for tpu_custom_call.1']
    #allocation4 [shape = 's32[2]{0}', space=sflag, size = 0x8, scoped, tag = 'scoped memory for tpu_custom_call.1']
    #allocation5 [shape = 'u8[262144]{0}', space=vmem, size = 0x40000, scoped, tag = 'input window, operand 1']
    #allocation6 [shape = 's32[2]{0}', space=sflag, size = 0x8, scoped, tag = 'scoped memory for tpu_custom_call.1']
    #allocation7 [shape = 'u8[131072]{0}', space=vmem, size = 0x20000, scoped, tag = 'output window, operand 0']
    %7 = vsyncpa [#allocation3], 0
    %8 = vsyncpa [#allocation6], 0
    %s9 = scalar_lea.sflag [#allocation6], 1
    %10 = vsyncpa %s9, 0
    %11 = vsyncpa [#allocation4], 0
    %s12 = scalar_lea.sflag [#allocation4], 1
    %13 = vsyncpa %s12, 0
    loop: start=0, step=1, limit=4
    $region2: #{tpu_custom_call.1} parent=1 // loop_pre_header
      _
    $region3: #{tpu_custom_call.1} parent=1 // loop_header
      %s15 = sphi 0, %s19
      %p16 = scmp.ge.s32.totalorder %s15, 4
      %s22 = sphi 0, %s41
      %s23 = sphi 0, %s37
      %s24 = sphi 0, %s33
      %s25 = sphi 0, %s22
      %s26 = sphi 0, %s23
      %s27 = sphi 0, %s24
      %s28 = sphi 0, %s25
      %s29 = sphi 0, %s26
      %s30 = sphi 0, %s27
      %s46 = sphi 0, %s48
      %s49 = sphi 0, %s46
      %s50 = sphi 0, %s49
      %s66 = sphi 0, %s50
      %s74 = sphi 0, %s76
      %s77 = sphi 0, %s74
      %s78 = sphi 0, %s77
      %s94 = sphi 0, %s78
      %s102 = sphi 0, %s104
      %s105 = sphi 0, %s102
      %s106 = sphi 0, %s105
      %s122 = sphi 0, %s106
    $region4: #{tpu_custom_call.1} parent=1 // loop_header_branch
      %18 = sbr.rel (%p16) target = $region8
    $region5: #{tpu_custom_call.1} parent=1 // loop_body
      %s20 = ssub.s32 %s15, 1
      %s21 = ssub.s32 %s15, 2
      %s31 = sadd.s32 1, %s24
      %p32 = scmp.ge.s32.totalorder %s31, 1
      %s33 = scalar_select %p32, 0, %s31
      %s34 = sadd.s32 1, %s23
      %s35 = scalar_select %p32, %s34, %s23
      %p36 = scmp.ge.s32.totalorder %s35, 2
      %s37 = scalar_select %p36, 0, %s35
      %s38 = sadd.s32 1, %s22
      %s39 = scalar_select %p36, %s38, %s22
      %p40 = scmp.ge.s32.totalorder %s39, 1
      %s41 = scalar_select %p40, 0, %s39
      %s42 = ssub.s32 %s22, %s41
      %s43 = ssub.s32 %s24, %s33
      %s44 = sor.u32 %s42, %s43
      %p45 = scmp.eq.s32.totalorder %s44, 0
      %s47 = sadd.s32 %s46, 1
      %s48 = scalar_select %p45, %s46, %s47
      %p51 = pneg %p45
      %p52 = scmp.eq.s32.totalorder %s15, 1
      %p53 = por %p51, %p52
      %p54 = scmp.ne.s32.totalorder %s46, %s49
      %p55 = scmp.eq.s32.totalorder %s15, 0
      %p56 = por %p54, %p55
      %p57 = scmp.ne.s32.totalorder %s46, %s49
      %p58 = scmp.eq.s32.totalorder %s20, 1
      %p59 = por %p57, %p58
      %p60 = scmp.ne.s32.totalorder %s49, %s50
      %p61 = scmp.eq.s32.totalorder %s20, 0
      %p62 = por %p60, %p61
      %p63 = scmp.ne.s32.totalorder %s49, %s50
      %p64 = scmp.eq.s32.totalorder %s21, 1
      %p65 = por %p63, %p64
      %p67 = scmp.ne.s32.totalorder %s50, %s66
      %p68 = scmp.eq.s32.totalorder %s21, 0
      %p69 = por %p67, %p68
      %s70 = ssub.s32 %s23, %s37
      %s71 = ssub.s32 %s24, %s33
      %s72 = sor.u32 %s70, %s71
      %p73 = scmp.eq.s32.totalorder %s72, 0
      %s75 = sadd.s32 %s74, 1
      %s76 = scalar_select %p73, %s74, %s75
      %p79 = pneg %p73
      %p80 = scmp.eq.s32.totalorder %s15, 1
      %p81 = por %p79, %p80
      %p82 = scmp.ne.s32.totalorder %s74, %s77
      %p83 = scmp.eq.s32.totalorder %s15, 0
      %p84 = por %p82, %p83
      %p85 = scmp.ne.s32.totalorder %s74, %s77
      %p86 = scmp.eq.s32.totalorder %s20, 1
      %p87 = por %p85, %p86
      %p88 = scmp.ne.s32.totalorder %s77, %s78
      %p89 = scmp.eq.s32.totalorder %s20, 0
      %p90 = por %p88, %p89
      %p91 = scmp.ne.s32.totalorder %s77, %s78
      %p92 = scmp.eq.s32.totalorder %s21, 1
      %p93 = por %p91, %p92
      %p95 = scmp.ne.s32.totalorder %s78, %s94
      %p96 = scmp.eq.s32.totalorder %s21, 0
      %p97 = por %p95, %p96
      %s98 = ssub.s32 %s22, %s41
      %s99 = ssub.s32 %s23, %s37
      %s100 = sor.u32 %s98, %s99
      %p101 = scmp.eq.s32.totalorder %s100, 0
      %s103 = sadd.s32 %s102, 1
      %s104 = scalar_select %p101, %s102, %s103
      %p107 = pneg %p101
      %p108 = scmp.eq.s32.totalorder %s15, 1
      %p109 = por %p107, %p108
      %p110 = scmp.ne.s32.totalorder %s102, %s105
      %p111 = scmp.eq.s32.totalorder %s15, 0
      %p112 = por %p110, %p111
      %p113 = scmp.ne.s32.totalorder %s102, %s105
      %p114 = scmp.eq.s32.totalorder %s20, 1
      %p115 = por %p113, %p114
      %p116 = scmp.ne.s32.totalorder %s105, %s106
      %p117 = scmp.eq.s32.totalorder %s20, 0
      %p118 = por %p116, %p117
      %p119 = scmp.ne.s32.totalorder %s105, %s106
      %p120 = scmp.eq.s32.totalorder %s21, 1
      %p121 = por %p119, %p120
      %p123 = scmp.ne.s32.totalorder %s106, %s122
      %p124 = scmp.eq.s32.totalorder %s21, 0
      %p125 = por %p123, %p124
      %p126 = scmp.le.s32.totalorder 1, %s15
      %p127 = scmp.lt.s32.totalorder %s15, 3
      %p128 = pnand %p126, %p127
      %p129 = pneg %p128
      // Predicated region
      $region9: #{tpu_custom_call.1} parent=5 // pred_check
        _
      $region10: #{tpu_custom_call.1} parent=5 // pred_check_branch
        %131 = sbr.rel (%p128) target = $region12
      $region11: #{tpu_custom_call.1} parent=5 // pred_region
        %s132 = ssub.s32 %s15, 1
        // Predicated region
        $region13: #{tpu_custom_call.1} parent=11 // pred_check
          %p133 = pneg %p62
        $region14: #{tpu_custom_call.1} parent=11 // pred_check_branch
          %135 = sbr.rel (%p133) target = $region16
        $region15: #{tpu_custom_call.1} parent=11 // pred_region
          %s136 = smul.u32 16, %s25
          %s137 = smul.u32 2, %s27
          %139 = vsyncadd [#allocation3], 0
          %s140 = smul.addr %s136, 2
          %s141 = sadd.s32 %s137, %s140
          %s142 = smul.addr %s141, 8
          %s143 = scalar_lea.hbm %s0, %s142
          %s144 = sshll.u32 %s143, 4
          %s145 = int_to_ptr.hbm [resolvable:$true] %s144
          %s146 = sshll.u32 [#allocation2], 4
          %s147 = int_to_ptr.vmem [resolvable:$true] %s146
          %152 = dma.hbm_to_vmem [thread:$0]  %s145, 4096, %s147, [#allocation3], 256, 256, 16
        $region16: #{tpu_custom_call.1} parent=11 // pred_fallthru
          _
      $region12: #{tpu_custom_call.1} parent=5 // pred_fallthru
        _
      %p153 = scmp.lt.s32.totalorder %s15, 2
      // Predicated region
      $region17: #{tpu_custom_call.1} parent=5 // pred_check
        %p154 = pneg %p153
      $region18: #{tpu_custom_call.1} parent=5 // pred_check_branch
        %156 = sbr.rel (%p154) target = $region20
      $region19: #{tpu_custom_call.1} parent=5 // pred_region
        // Predicated region
        $region21: #{tpu_custom_call.1} parent=19 // pred_check
          %p157 = pneg %p84
        $region22: #{tpu_custom_call.1} parent=19 // pred_check_branch
          %159 = sbr.rel (%p157) target = $region24
        $region23: #{tpu_custom_call.1} parent=19 // pred_region
          %s160 = sand.u32 %s74, 1
          %s161 = scalar_lea.sflag [#allocation6], %s160
          %s162 = sand.u32 %s74, 1
          %s163 = smul.addr %s162, 256
          %s164 = scalar_lea.vmem [#allocation5], %s163
          %s165 = smul.u32 16, %s23
          %s166 = smul.u32 2, %s24
          %168 = vsyncadd %s161, 0
          %s169 = smul.addr %s165, 2
          %s170 = sadd.s32 %s166, %s169
          %s171 = smul.addr %s170, 8
          %s172 = scalar_lea.hbm %s1, %s171
          %s173 = sshll.u32 %s172, 4
          %s174 = int_to_ptr.hbm [resolvable:$true] %s173
          %s175 = sshll.u32 %s164, 4
          %s176 = int_to_ptr.vmem [resolvable:$true] %s175
          %181 = dma.hbm_to_vmem [thread:$0]  %s174, 4096, %s176, %s161, 256, 256, 16
        $region24: #{tpu_custom_call.1} parent=19 // pred_fallthru
          _
      $region20: #{tpu_custom_call.1} parent=5 // pred_fallthru
        _
      %p182 = scmp.le.s32.totalorder 1, %s15
      %p183 = scmp.lt.s32.totalorder %s15, 3
      %p184 = pnand %p182, %p183
      %p185 = pneg %p184
      // Predicated region
      $region25: #{tpu_custom_call.1} parent=5 // pred_check
        _
      $region26: #{tpu_custom_call.1} parent=5 // pred_check_branch
        %187 = sbr.rel (%p184) target = $region28
      $region27: #{tpu_custom_call.1} parent=5 // pred_region
        %s188 = ssub.s32 %s15, 1
        // Predicated region
        $region29: #{tpu_custom_call.1} parent=27 // pred_check
          %p189 = pneg %p62
        $region30: #{tpu_custom_call.1} parent=27 // pred_check_branch
          %191 = sbr.rel (%p189) target = $region32
        $region31: #{tpu_custom_call.1} parent=27 // pred_region
          %193 = dma.done [#allocation3], 4096
        $region32: #{tpu_custom_call.1} parent=27 // pred_fallthru
          _
        %s194 = sand.u32 %s77, 1
        %s195 = scalar_lea.sflag [#allocation6], %s194
        %s196 = sand.u32 %s77, 1
        %s197 = smul.addr %s196, 256
        %s198 = scalar_lea.vmem [#allocation5], %s197
        // Predicated region
        $region33: #{tpu_custom_call.1} parent=27 // pred_check
          %p199 = pneg %p90
        $region34: #{tpu_custom_call.1} parent=27 // pred_check_branch
          %201 = sbr.rel (%p199) target = $region36
        $region35: #{tpu_custom_call.1} parent=27 // pred_region
          %203 = dma.done %s195, 4096
        $region36: #{tpu_custom_call.1} parent=27 // pred_fallthru
          _
        %p204 = pneg %p62
        %p205 = pneg %p59
        %s206 = sand.u32 %s77, 1
        %s207 = scalar_lea.sflag [#allocation6], %s206
        %s208 = sand.u32 %s77, 1
        %s209 = smul.addr %s208, 256
        %s210 = scalar_lea.vmem [#allocation5], %s209
        %p211 = pneg %p90
        %p212 = pneg %p87
        %p213 = pneg %p118
        %p214 = pneg %p115
        %s215 = sand.u32 %s105, 1
        %s216 = scalar_lea.sflag [#allocation4], %s215
        %s217 = sand.u32 %s105, 1
        %s218 = smul.addr %s217, 128
        %s219 = scalar_lea.vmem [#allocation7], %s218
        %s220 = smul.u32 16, %s25
        %s221 = smul.u32 2, %s27
        %s222 = smul.u32 16, %s26
        %s223 = smul.u32 2, %s27
        %s224 = smul.u32 16, %s25
        %p225 = scmp.eq.s32.totalorder %s27, 0
        // Predicated region
        $region37: #{tpu_custom_call.1} parent=27 // pred_check
          %p226 = pneg %p225
        $region38: #{tpu_custom_call.1} parent=27 // pred_check_branch
          %228 = sbr.rel (%p226) target = $region40
        $region39: #{tpu_custom_call.1} parent=27 // pred_region
          %229 = vst [vmem:[%s219] sm:$0xff] 0.0
          %230 = vst [vmem:[%s219 + $0x8] sm:$0xff] 0.0
          %231 = vst [vmem:[%s219 + $0x10] sm:$0xff] 0.0
          %232 = vst [vmem:[%s219 + $0x18] sm:$0xff] 0.0
          %233 = vst [vmem:[%s219 + $0x20] sm:$0xff] 0.0
          %234 = vst [vmem:[%s219 + $0x28] sm:$0xff] 0.0
          %235 = vst [vmem:[%s219 + $0x30] sm:$0xff] 0.0
          %236 = vst [vmem:[%s219 + $0x38] sm:$0xff] 0.0
          %237 = vst [vmem:[%s219 + $0x40] sm:$0xff] 0.0
          %238 = vst [vmem:[%s219 + $0x48] sm:$0xff] 0.0
          %239 = vst [vmem:[%s219 + $0x50] sm:$0xff] 0.0
          %240 = vst [vmem:[%s219 + $0x58] sm:$0xff] 0.0
          %241 = vst [vmem:[%s219 + $0x60] sm:$0xff] 0.0
          %242 = vst [vmem:[%s219 + $0x68] sm:$0xff] 0.0
          %243 = vst [vmem:[%s219 + $0x70] sm:$0xff] 0.0
          %244 = vst [vmem:[%s219 + $0x78] sm:$0xff] 0.0
        $region40: #{tpu_custom_call.1} parent=27 // pred_fallthru
          _
        %v245 = vld [vmem:[%s219] sm:$0xff]
        %v246 = vld [vmem:[%s219 + $0x8] sm:$0xff]
        %v247 = vld [vmem:[%s219 + $0x10] sm:$0xff]
        %v248 = vld [vmem:[%s219 + $0x18] sm:$0xff]
        %v249 = vld [vmem:[%s219 + $0x20] sm:$0xff]
        %v250 = vld [vmem:[%s219 + $0x28] sm:$0xff]
        %v251 = vld [vmem:[%s219 + $0x30] sm:$0xff]
        %v252 = vld [vmem:[%s219 + $0x38] sm:$0xff]
        %v253 = vld [vmem:[%s219 + $0x40] sm:$0xff]
        %v254 = vld [vmem:[%s219 + $0x48] sm:$0xff]
        %v255 = vld [vmem:[%s219 + $0x50] sm:$0xff]
        %v256 = vld [vmem:[%s219 + $0x58] sm:$0xff]
        %v257 = vld [vmem:[%s219 + $0x60] sm:$0xff]
        %v258 = vld [vmem:[%s219 + $0x68] sm:$0xff]
        %v259 = vld [vmem:[%s219 + $0x70] sm:$0xff]
        %v260 = vld [vmem:[%s219 + $0x78] sm:$0xff]
        %v261 = vld [vmem:[#allocation2] sm:$0xff]
        %v262 = vld [vmem:[#allocation2 + $0x8] sm:$0xff]
        %v263 = vld [vmem:[#allocation2 + $0x10] sm:$0xff]
        %v264 = vld [vmem:[#allocation2 + $0x18] sm:$0xff]
        %v265 = vld [vmem:[#allocation2 + $0x20] sm:$0xff]
        %v266 = vld [vmem:[#allocation2 + $0x28] sm:$0xff]
        %v267 = vld [vmem:[#allocation2 + $0x30] sm:$0xff]
        %v268 = vld [vmem:[#allocation2 + $0x38] sm:$0xff]
        %v269 = vld [vmem:[#allocation2 + $0x40] sm:$0xff]
        %v270 = vld [vmem:[#allocation2 + $0x48] sm:$0xff]
        %v271 = vld [vmem:[#allocation2 + $0x50] sm:$0xff]
        %v272 = vld [vmem:[#allocation2 + $0x58] sm:$0xff]
        %v273 = vld [vmem:[#allocation2 + $0x60] sm:$0xff]
        %v274 = vld [vmem:[#allocation2 + $0x68] sm:$0xff]
        %v275 = vld [vmem:[#allocation2 + $0x70] sm:$0xff]
        %v276 = vld [vmem:[#allocation2 + $0x78] sm:$0xff]
        %v277 = vld [vmem:[#allocation2 + $0x80] sm:$0xff]
        %v278 = vld [vmem:[#allocation2 + $0x88] sm:$0xff]
        %v279 = vld [vmem:[#allocation2 + $0x90] sm:$0xff]
        %v280 = vld [vmem:[#allocation2 + $0x98] sm:$0xff]
        %v281 = vld [vmem:[#allocation2 + $0xa0] sm:$0xff]
        %v282 = vld [vmem:[#allocation2 + $0xa8] sm:$0xff]
        %v283 = vld [vmem:[#allocation2 + $0xb0] sm:$0xff]
        %v284 = vld [vmem:[#allocation2 + $0xb8] sm:$0xff]
        %v285 = vld [vmem:[#allocation2 + $0xc0] sm:$0xff]
        %v286 = vld [vmem:[#allocation2 + $0xc8] sm:$0xff]
        %v287 = vld [vmem:[#allocation2 + $0xd0] sm:$0xff]
        %v288 = vld [vmem:[#allocation2 + $0xd8] sm:$0xff]
        %v289 = vld [vmem:[#allocation2 + $0xe0] sm:$0xff]
        %v290 = vld [vmem:[#allocation2 + $0xe8] sm:$0xff]
        %v291 = vld [vmem:[#allocation2 + $0xf0] sm:$0xff]
        %v292 = vld [vmem:[#allocation2 + $0xf8] sm:$0xff]
        %v293 = vld [vmem:[%s198] sm:$0xff]
        %v294 = vld [vmem:[%s198 + $0x8] sm:$0xff]
        %v295 = vld [vmem:[%s198 + $0x10] sm:$0xff]
        %v296 = vld [vmem:[%s198 + $0x18] sm:$0xff]
        %v297 = vld [vmem:[%s198 + $0x20] sm:$0xff]
        %v298 = vld [vmem:[%s198 + $0x28] sm:$0xff]
        %v299 = vld [vmem:[%s198 + $0x30] sm:$0xff]
        %v300 = vld [vmem:[%s198 + $0x38] sm:$0xff]
        %v301 = vld [vmem:[%s198 + $0x40] sm:$0xff]
        %v302 = vld [vmem:[%s198 + $0x48] sm:$0xff]
        %v303 = vld [vmem:[%s198 + $0x50] sm:$0xff]
        %v304 = vld [vmem:[%s198 + $0x58] sm:$0xff]
        %v305 = vld [vmem:[%s198 + $0x60] sm:$0xff]
        %v306 = vld [vmem:[%s198 + $0x68] sm:$0xff]
        %v307 = vld [vmem:[%s198 + $0x70] sm:$0xff]
        %v308 = vld [vmem:[%s198 + $0x78] sm:$0xff]
        %v309 = vld [vmem:[%s198 + $0x80] sm:$0xff]
        %v310 = vld [vmem:[%s198 + $0x88] sm:$0xff]
        %v311 = vld [vmem:[%s198 + $0x90] sm:$0xff]
        %v312 = vld [vmem:[%s198 + $0x98] sm:$0xff]
        %v313 = vld [vmem:[%s198 + $0xa0] sm:$0xff]
        %v314 = vld [vmem:[%s198 + $0xa8] sm:$0xff]
        %v315 = vld [vmem:[%s198 + $0xb0] sm:$0xff]
        %v316 = vld [vmem:[%s198 + $0xb8] sm:$0xff]
        %v317 = vld [vmem:[%s198 + $0xc0] sm:$0xff]
        %v318 = vld [vmem:[%s198 + $0xc8] sm:$0xff]
        %v319 = vld [vmem:[%s198 + $0xd0] sm:$0xff]
        %v320 = vld [vmem:[%s198 + $0xd8] sm:$0xff]
        %v321 = vld [vmem:[%s198 + $0xe0] sm:$0xff]
        %v322 = vld [vmem:[%s198 + $0xe8] sm:$0xff]
        %v323 = vld [vmem:[%s198 + $0xf0] sm:$0xff]
        %v324 = vld [vmem:[%s198 + $0xf8] sm:$0xff]
        %325 = vmatpush.xpose.msra.mxu0 %v323
        %326 = vmatpush.xpose.msra.mxu0 %v321
        %327 = vmatpush.xpose.msra.mxu0 %v319
        %328 = vmatpush.xpose.msra.mxu0 %v317
        %329 = vmatpush.xpose.msra.mxu0 %v315
        %330 = vmatpush.xpose.msra.mxu0 %v313
        %331 = vmatpush.xpose.msra.mxu0 %v311
        %332 = vmatpush.xpose.msra.mxu0 %v309
        %333 = vmatpush.xpose.msra.mxu0 %v307
        %334 = vmatpush.xpose.msra.mxu0 %v305
        %335 = vmatpush.xpose.msra.mxu0 %v303
        %336 = vmatpush.xpose.msra.mxu0 %v301
        %337 = vmatpush.xpose.msra.mxu0 %v299
        %338 = vmatpush.xpose.msra.mxu0 %v297
        %339 = vmatpush.xpose.msra.mxu0 %v295
        %340 = vmatpush.xpose.msra.mxu0 %v293
        %341 = vmatmul.f32.gmra.mxu0 %v261
        %v342 = vpop.f32.mrf.mxu0
        %v343 = vadd.f32 0.0, %v342
        %344 = vmatmul.f32.gmra.mxu0 %v263
        %v345 = vpop.f32.mrf.mxu0
        %v346 = vadd.f32 0.0, %v345
        %347 = vmatmul.f32.gmra.mxu0 %v265
        %v348 = vpop.f32.mrf.mxu0
        %v349 = vadd.f32 0.0, %v348
        %350 = vmatmul.f32.gmra.mxu0 %v267
        %v351 = vpop.f32.mrf.mxu0
        %v352 = vadd.f32 0.0, %v351
        %353 = vmatmul.f32.gmra.mxu0 %v269
        %v354 = vpop.f32.mrf.mxu0
        %v355 = vadd.f32 0.0, %v354
        %356 = vmatmul.f32.gmra.mxu0 %v271
        %v357 = vpop.f32.mrf.mxu0
        %v358 = vadd.f32 0.0, %v357
        %359 = vmatmul.f32.gmra.mxu0 %v273
        %v360 = vpop.f32.mrf.mxu0
        %v361 = vadd.f32 0.0, %v360
        %362 = vmatmul.f32.gmra.mxu0 %v275
        %v363 = vpop.f32.mrf.mxu0
        %v364 = vadd.f32 0.0, %v363
        %365 = vmatmul.f32.gmra.mxu0 %v277
        %v366 = vpop.f32.mrf.mxu0
        %v367 = vadd.f32 0.0, %v366
        %368 = vmatmul.f32.gmra.mxu0 %v279
        %v369 = vpop.f32.mrf.mxu0
        %v370 = vadd.f32 0.0, %v369
        %371 = vmatmul.f32.gmra.mxu0 %v281
        %v372 = vpop.f32.mrf.mxu0
        %v373 = vadd.f32 0.0, %v372
        %374 = vmatmul.f32.gmra.mxu0 %v283
        %v375 = vpop.f32.mrf.mxu0
        %v376 = vadd.f32 0.0, %v375
        %377 = vmatmul.f32.gmra.mxu0 %v285
        %v378 = vpop.f32.mrf.mxu0
        %v379 = vadd.f32 0.0, %v378
        %380 = vmatmul.f32.gmra.mxu0 %v287
        %v381 = vpop.f32.mrf.mxu0
        %v382 = vadd.f32 0.0, %v381
        %383 = vmatmul.f32.gmra.mxu0 %v289
        %v384 = vpop.f32.mrf.mxu0
        %v385 = vadd.f32 0.0, %v384
        %386 = vmatmul.f32.gmra.mxu0 %v291
        %v387 = vpop.f32.mrf.mxu0
        %v388 = vadd.f32 0.0, %v387
        %389 = vdwg.mxu0
        %390 = vmatpush.xpose.msra.mxu0 %v324
        %391 = vmatpush.xpose.msra.mxu0 %v322
        %392 = vmatpush.xpose.msra.mxu0 %v320
        %393 = vmatpush.xpose.msra.mxu0 %v318
        %394 = vmatpush.xpose.msra.mxu0 %v316
        %395 = vmatpush.xpose.msra.mxu0 %v314
        %396 = vmatpush.xpose.msra.mxu0 %v312
        %397 = vmatpush.xpose.msra.mxu0 %v310
        %398 = vmatpush.xpose.msra.mxu0 %v308
        %399 = vmatpush.xpose.msra.mxu0 %v306
        %400 = vmatpush.xpose.msra.mxu0 %v304
        %401 = vmatpush.xpose.msra.mxu0 %v302
        %402 = vmatpush.xpose.msra.mxu0 %v300
        %403 = vmatpush.xpose.msra.mxu0 %v298
        %404 = vmatpush.xpose.msra.mxu0 %v296
        %405 = vmatpush.xpose.msra.mxu0 %v294
        %406 = vmatmul.f32.gmra.mxu0 %v262
        %v407 = vpop.f32.mrf.mxu0
        %v408 = vadd.f32 %v343, %v407
        %409 = vmatmul.f32.gmra.mxu0 %v264
        %v410 = vpop.f32.mrf.mxu0
        %v411 = vadd.f32 %v346, %v410
        %412 = vmatmul.f32.gmra.mxu0 %v266
        %v413 = vpop.f32.mrf.mxu0
        %v414 = vadd.f32 %v349, %v413
        %415 = vmatmul.f32.gmra.mxu0 %v268
        %v416 = vpop.f32.mrf.mxu0
        %v417 = vadd.f32 %v352, %v416
        %418 = vmatmul.f32.gmra.mxu0 %v270
        %v419 = vpop.f32.mrf.mxu0
        %v420 = vadd.f32 %v355, %v419
        %421 = vmatmul.f32.gmra.mxu0 %v272
        %v422 = vpop.f32.mrf.mxu0
        %v423 = vadd.f32 %v358, %v422
        %424 = vmatmul.f32.gmra.mxu0 %v274
        %v425 = vpop.f32.mrf.mxu0
        %v426 = vadd.f32 %v361, %v425
        %427 = vmatmul.f32.gmra.mxu0 %v276
        %v428 = vpop.f32.mrf.mxu0
        %v429 = vadd.f32 %v364, %v428
        %430 = vmatmul.f32.gmra.mxu0 %v278
        %v431 = vpop.f32.mrf.mxu0
        %v432 = vadd.f32 %v367, %v431
        %433 = vmatmul.f32.gmra.mxu0 %v280
        %v434 = vpop.f32.mrf.mxu0
        %v435 = vadd.f32 %v370, %v434
        %436 = vmatmul.f32.gmra.mxu0 %v282
        %v437 = vpop.f32.mrf.mxu0
        %v438 = vadd.f32 %v373, %v437
        %439 = vmatmul.f32.gmra.mxu0 %v284
        %v440 = vpop.f32.mrf.mxu0
        %v441 = vadd.f32 %v376, %v440
        %442 = vmatmul.f32.gmra.mxu0 %v286
        %v443 = vpop.f32.mrf.mxu0
        %v444 = vadd.f32 %v379, %v443
        %445 = vmatmul.f32.gmra.mxu0 %v288
        %v446 = vpop.f32.mrf.mxu0
        %v447 = vadd.f32 %v382, %v446
        %448 = vmatmul.f32.gmra.mxu0 %v290
        %v449 = vpop.f32.mrf.mxu0
        %v450 = vadd.f32 %v385, %v449
        %451 = vmatmul.f32.gmra.mxu0 %v292
        %v452 = vpop.f32.mrf.mxu0
        %v453 = vadd.f32 %v388, %v452
        %454 = vdwg.mxu0
        %v455 = vadd.f32 %v245, %v408
        %v456 = vadd.f32 %v246, %v411
        %v457 = vadd.f32 %v247, %v414
        %v458 = vadd.f32 %v248, %v417
        %v459 = vadd.f32 %v249, %v420
        %v460 = vadd.f32 %v250, %v423
        %v461 = vadd.f32 %v251, %v426
        %v462 = vadd.f32 %v252, %v429
        %v463 = vadd.f32 %v253, %v432
        %v464 = vadd.f32 %v254, %v435
        %v465 = vadd.f32 %v255, %v438
        %v466 = vadd.f32 %v256, %v441
        %v467 = vadd.f32 %v257, %v444
        %v468 = vadd.f32 %v258, %v447
        %v469 = vadd.f32 %v259, %v450
        %v470 = vadd.f32 %v260, %v453
        %471 = vst [vmem:[%s219] sm:$0xff] %v455
        %472 = vst [vmem:[%s219 + $0x8] sm:$0xff] %v456
        %473 = vst [vmem:[%s219 + $0x10] sm:$0xff] %v457
        %474 = vst [vmem:[%s219 + $0x18] sm:$0xff] %v458
        %475 = vst [vmem:[%s219 + $0x20] sm:$0xff] %v459
        %476 = vst [vmem:[%s219 + $0x28] sm:$0xff] %v460
        %477 = vst [vmem:[%s219 + $0x30] sm:$0xff] %v461
        %478 = vst [vmem:[%s219 + $0x38] sm:$0xff] %v462
        %479 = vst [vmem:[%s219 + $0x40] sm:$0xff] %v463
        %480 = vst [vmem:[%s219 + $0x48] sm:$0xff] %v464
        %481 = vst [vmem:[%s219 + $0x50] sm:$0xff] %v465
        %482 = vst [vmem:[%s219 + $0x58] sm:$0xff] %v466
        %483 = vst [vmem:[%s219 + $0x60] sm:$0xff] %v467
        %484 = vst [vmem:[%s219 + $0x68] sm:$0xff] %v468
        %485 = vst [vmem:[%s219 + $0x70] sm:$0xff] %v469
        %486 = vst [vmem:[%s219 + $0x78] sm:$0xff] %v470
        %s487 = sand.u32 %s105, 1
        %s488 = scalar_lea.sflag [#allocation4], %s487
        %s489 = sand.u32 %s105, 1
        %s490 = smul.addr %s489, 128
        %s491 = scalar_lea.vmem [#allocation7], %s490
        // Predicated region
        $region41: #{tpu_custom_call.1} parent=27 // pred_check
          %p492 = pneg %p115
        $region42: #{tpu_custom_call.1} parent=27 // pred_check_branch
          %494 = sbr.rel (%p492) target = $region44
        $region43: #{tpu_custom_call.1} parent=27 // pred_region
          %s495 = smul.u32 16, %s25
          %497 = vsyncadd %s488, 0
          %s498 = smul.addr %s495, 2
          %s499 = sadd.s32 %s26, %s498
          %s500 = smul.addr %s499, 8
          %s501 = scalar_lea.hbm %s2, %s500
          %s502 = sshll.u32 %s491, 4
          %s503 = int_to_ptr.vmem [resolvable:$true] %s502
          %s504 = sshll.u32 %s501, 4
          %s505 = int_to_ptr.hbm [resolvable:$true] %s504
          %510 = dma.vmem_to_hbm [thread:$0]  %s503, 2048, %s505, %s488, 128, 256, 8
        $region44: #{tpu_custom_call.1} parent=27 // pred_fallthru
          _
      $region28: #{tpu_custom_call.1} parent=5 // pred_fallthru
        _
      %p511 = scmp.le.s32.totalorder 2, %s15
      // Predicated region
      $region45: #{tpu_custom_call.1} parent=5 // pred_check
        %p512 = pneg %p511
      $region46: #{tpu_custom_call.1} parent=5 // pred_check_branch
        %514 = sbr.rel (%p512) target = $region48
      $region47: #{tpu_custom_call.1} parent=5 // pred_region
        %s515 = ssub.s32 %s15, 2
        // Predicated region
        $region49: #{tpu_custom_call.1} parent=47 // pred_check
          %p516 = pneg %p121
        $region50: #{tpu_custom_call.1} parent=47 // pred_check_branch
          %518 = sbr.rel (%p516) target = $region52
        $region51: #{tpu_custom_call.1} parent=47 // pred_region
          %s519 = sand.u32 %s106, 1
          %s520 = scalar_lea.sflag [#allocation4], %s519
          %s521 = sand.u32 %s106, 1
          %s522 = smul.addr %s521, 128
          %s523 = scalar_lea.vmem [#allocation7], %s522
          %525 = dma.done %s520, 2048
        $region52: #{tpu_custom_call.1} parent=47 // pred_fallthru
          _
      $region48: #{tpu_custom_call.1} parent=5 // pred_fallthru
        _
    $region6: #{tpu_custom_call.1} parent=1 // loop_footer
      %s19 = sadd.s32 1, %s15
    $region7: #{tpu_custom_call.1} parent=1 // loop_footer_branch
      %14 = sbr.rel target = $region3
    $region8: #{tpu_custom_call.1} parent=1 // loop_exit
      _
    %526 = vsyncpa [#allocation3], 1
    %s527 = scalar_lea.sflag [#allocation3], 1
    %528 = vsyncpa %s527, 1
    %529 = vsyncpa [#allocation6], 1
    %s530 = scalar_lea.sflag [#allocation6], 1
    %531 = vsyncpa %s530, 1
    %532 = vsyncpa [#allocation4], 1
    %s533 = scalar_lea.sflag [#allocation4], 1
    %534 = vsyncpa %s533, 1

</llo_original>
